<compile_context>
chip_gen: v7x
topology: tpu7x:2x2x1
jax: 0.10.0
libtpu: 0.0.40
codegen_flags: <defaults>
</compile_context>

<pallas_src>
import jax
import jax.numpy as jnp
from jax.experimental import pallas as pl
from jax.experimental.pallas import tpu as pltpu


def _drop_path_kernel(s_ref, x_ref, o_ref):
    # s_ref: (Rt, 1) float32, values in {0, 1/keep_prob}.
    # x_ref / o_ref: (Rt, C) in the input dtype.
    # Multiply in the native dtype (kernel is mem-bound; avoids the f32
    # up/down-cast passes for bf16 on v6e/v7x).
    # TODO(synk): on v5e an f32 math path for sub-32-bit dtypes would match the
    # reference to the last ulp; native-precision multiply is within DropPath
    # tolerance.
    o_ref[...] = x_ref[...] * s_ref[...].astype(x_ref.dtype)


def _choose_cols(m, itemsize, target_bytes):
    """Per-block column width: the full per-sample size if it fits the block
    budget, else the largest 128-multiple divisor of m that fits."""
    if m * itemsize <= target_bytes:
        return m
    c = (target_bytes // itemsize) // 128 * 128
    while c >= 128:
        if m % c == 0:
            return c
        c -= 128
    # No lane-aligned divisor of m; fall back to full rows (vmem limit below
    # grows accordingly).
    return m


def drop_path_pallas(x, drop_prob: float, training: bool, key, *, block_bytes=1 << 20):
    """DropPath forward. x: (B, ...) — mask is per leading (batch) dim."""
    if drop_prob == 0.0 or not training:
        return x
    keep_prob = 1.0 - drop_prob

    orig_shape = x.shape
    b = orig_shape[0]
    m = 1
    for d in orig_shape[1:]:
        m *= d
    itemsize = x.dtype.itemsize

    # Per-sample Bernoulli keep mask, same construction as the reference:
    # floor(keep_prob + U[0,1)) -> 1 w.p. keep_prob else 0.  Pre-scaled by
    # 1/keep_prob so the kernel body is one broadcast multiply.
    u = jax.random.uniform(key, (b,), dtype=jnp.float32)
    scale = jnp.floor(keep_prob + u) * (1.0 / keep_prob)            # (B,)

    # Lane-dense 2D layout; rows stay sample-aligned.
    cols = _choose_cols(m, itemsize, block_bytes)
    rows_per_sample = m // cols
    rows = b * rows_per_sample
    x2d = x.reshape(rows, cols)
    scale_rows = jnp.broadcast_to(scale[:, None], (b, rows_per_sample))
    scale_rows = scale_rows.reshape(rows, 1)                        # (rows, 1) f32

    # Rows per block: multiple of the dtype sublane tile, or all rows.
    sublane = 8 * max(1, 4 // itemsize)            # 8 f32 / 16 bf16 / 32 int8
    rows_fit = max(1, block_bytes // (cols * itemsize))
    if rows_fit >= rows:
        rt = rows
    else:
        rt = min(rows, max(sublane, (rows_fit // sublane) * sublane))
    grid = (pl.cdiv(rows, rt),)

    # VMEM budget: in + out double-buffered, plus the scale column and slack.
    block_x_bytes = rt * cols * itemsize
    vmem_need = 4 * block_x_bytes + 4 * rt * 4 + (2 << 20)
    vmem_limit = min(max(vmem_need, 16 << 20), 48 << 20)

    out2d = pl.pallas_call(
        _drop_path_kernel,
        out_shape=jax.ShapeDtypeStruct((rows, cols), x.dtype),
        grid=grid,
        in_specs=[
            pl.BlockSpec((rt, 1), lambda i: (i, 0)),      # per-row scale
            pl.BlockSpec((rt, cols), lambda i: (i, 0)),   # x slab
        ],
        out_specs=pl.BlockSpec((rt, cols), lambda i: (i, 0)),
        compiler_params=pltpu.CompilerParams(
            dimension_semantics=("parallel",),
            vmem_limit_bytes=vmem_limit),
    )(scale_rows, x2d)

    return out2d.reshape(orig_shape)


if __name__ == "__main__":
    root = jax.random.PRNGKey(0)
    k_x, k_mask, k_x2 = jax.random.split(root, 3)

    drop_prob = 0.25
    keep_prob = 1.0 - drop_prob

    # Case 1: ViT-ish small shape; whole batch fits one lane-dense block.
    B, N, D = 4, 16, 128
    x = jax.random.normal(k_x, (B, N, D), dtype=jnp.float32)
    out = jax.block_until_ready(drop_path_pallas(x, drop_prob, True, k_mask))

    u = jax.random.uniform(k_mask, (B,), dtype=jnp.float32)
    mask = jnp.floor(keep_prob + u).reshape(B, 1, 1)
    ref = (x / keep_prob) * mask
    assert out.shape == x.shape and out.dtype == x.dtype
    assert jnp.allclose(out, ref, atol=1e-5, rtol=1e-5)

    # Case 2: shrink the block budget so the grid has several blocks plus a
    # remainder block (exercises the multi-block / masked-edge path).
    B2, N2, D2 = 20, 8, 128
    x2 = jax.random.normal(k_x2, (B2, N2, D2), dtype=jnp.float32)
    out2 = jax.block_until_ready(
        drop_path_pallas(x2, drop_prob, True, k_mask, block_bytes=16 * 1024))
    u2 = jax.random.uniform(k_mask, (B2,), dtype=jnp.float32)
    mask2 = jnp.floor(keep_prob + u2).reshape(B2, 1, 1)
    ref2 = (x2 / keep_prob) * mask2
    assert out2.shape == x2.shape and out2.dtype == x2.dtype
    assert jnp.allclose(out2, ref2, atol=1e-5, rtol=1e-5)

    # Eval path / zero drop prob are the identity.
    out_eval = drop_path_pallas(x, drop_prob, training=False, key=k_mask)
    assert jnp.array_equal(jax.block_until_ready(out_eval), x)
    out_zero = drop_path_pallas(x, 0.0, training=True, key=k_mask)
    assert jnp.array_equal(jax.block_until_ready(out_zero), x)

    print("KERNEL_OK")
</pallas_src>

<mosaic_0001>
module attributes {stable_mosaic.version = 11 : i64} {
  func.func @_drop_path_kernel(%arg0: i32, %arg1: memref<4x1xf32, #tpu.memory_space<vmem>>, %arg2: memref<4x2048xf32, #tpu.memory_space<vmem>>, %arg3: memref<4x2048xf32, #tpu.memory_space<vmem>>) attributes {dimension_semantics = [#tpu.dimension_semantics<parallel>], iteration_bounds = array<i64: 1>, scalar_prefetch = 0 : i64, scratch_operands = 0 : i64, tpu.core_type = #tpu.core_type<tc>, window_params = [{transform_indices = @transform_0, window_bounds = array<i64: 4, 1>}, {transform_indices = @transform_1, window_bounds = array<i64: 4, 2048>}, {transform_indices = @transform_2, window_bounds = array<i64: 4, 2048>}]} {
    %c0 = arith.constant 0 : index
    %c0_0 = arith.constant 0 : index
    %0 = vector.load %arg2[%c0, %c0_0] : memref<4x2048xf32, #tpu.memory_space<vmem>>, vector<4x2048xf32>
    %c0_1 = arith.constant 0 : index
    %c0_2 = arith.constant 0 : index
    %1 = vector.load %arg1[%c0_1, %c0_2] : memref<4x1xf32, #tpu.memory_space<vmem>>, vector<4x1xf32>
    %2 = vector.broadcast %1 : vector<4x1xf32> to vector<4x2048xf32>
    %3 = arith.mulf %0, %2 : vector<4x2048xf32>
    %c0_3 = arith.constant 0 : index
    %c0_4 = arith.constant 0 : index
    %4 = vector.load %arg3[%c0_3, %c0_4] : memref<4x2048xf32, #tpu.memory_space<vmem>>, vector<4x2048xf32>
    tpu.vector_store %arg3[%c0_3, %c0_4], %3 {strides = array<i32>} : memref<4x2048xf32, #tpu.memory_space<vmem>>, vector<4x2048xf32>,
    return
  }
  func.func @transform_0(%arg0: i32) -> (i32, i32) {
    %c0_i32 = arith.constant 0 : i32
    %c0_i32_0 = arith.constant 0 : i32
    return %arg0, %c0_i32 : i32, i32
  }
  func.func @transform_1(%arg0: i32) -> (i32, i32) {
    %c0_i32 = arith.constant 0 : i32
    %c0_i32_0 = arith.constant 0 : i32
    return %arg0, %c0_i32 : i32, i32
  }
  func.func @transform_2(%arg0: i32) -> (i32, i32) {
    %c0_i32 = arith.constant 0 : i32
    %c0_i32_0 = arith.constant 0 : i32
    return %arg0, %c0_i32 : i32, i32
  }
}

</mosaic_0001>

<llo_original>
// kernel: tpu_custom_call.1
$region0: #{tpu_custom_call.1}
  #allocation0 [shape = 'u32[]', space=smem, size = 0x4, offset = 0x4, fixed_abs, tag = 'smem constant byte address 0x4 - core index']
  #allocation1 [shape = 'u32[144,128]{1,0:T(1,128)}', space=vmem, size = 0x12000, scoped, tag = 'internal scratch']
  %s0 = inlined_call_operand.vmem [shape: f32[4,1], index: 0, kind: input, shape index: {}]
  %s1 = inlined_call_operand.hbm [shape: f32[4,2048], index: 1, kind: input, shape index: {}]
  %s2 = inlined_call_operand.hbm [shape: f32[4,2048], index: 2, kind: output, shape index: {}]
  %s3 = sld [smem:[#allocation0]]
  $region22: #{tpu_custom_call.1} parent=0
    _
  %s5 = ssub.s32 1, %s3
  %s6 = scalar_select 0, %s5, %s3
  $region1: #{tpu_custom_call.1} parent=0
    #allocation2 [shape = 'u8[32768]{0}', space=vmem, size = 0x8000, scoped, tag = 'input window, operand 1, single buffered']
    #allocation3 [shape = 's32[1]{0}', space=sflag, size = 0x4, scoped, tag = 'scoped memory for tpu_custom_call.1']
    #allocation4 [shape = 's32[1]{0}', space=sflag, size = 0x4, scoped, tag = 'scoped memory for tpu_custom_call.1']
    #allocation5 [shape = 'u8[32768]{0}', space=vmem, size = 0x8000, scoped, tag = 'output window, operand 0, single buffered']
    %7 = vsyncpa [#allocation3], 0
    %8 = vsyncpa [#allocation4], 0
    // Predicated region
    $region2: #{tpu_custom_call.1} parent=1 // pred_check
      _
    $region3: #{tpu_custom_call.1} parent=1 // pred_check_branch
      %10 = sbr.rel (0) target = $region5
    $region4: #{tpu_custom_call.1} parent=1 // pred_region
      _
    $region5: #{tpu_custom_call.1} parent=1 // pred_fallthru
      _
    // Predicated region
    $region6: #{tpu_custom_call.1} parent=1 // pred_check
      _
    $region7: #{tpu_custom_call.1} parent=1 // pred_check_branch
      %12 = sbr.rel (0) target = $region9
    $region8: #{tpu_custom_call.1} parent=1 // pred_region
      %s14 = ssub.s32 1024, 1024
      %15 = vsyncadd [#allocation3], %s14
      %s17 = sshll.u32 [#allocation2], 4
      %s18 = int_to_ptr.vmem [resolvable:$true] %s17
      %20 = dma.hbm_to_vmem [thread:$0]  %s1, 1024, %s18, [#allocation3]
    $region9: #{tpu_custom_call.1} parent=1 // pred_fallthru
      _
    // Predicated region
    $region10: #{tpu_custom_call.1} parent=1 // pred_check
      _
    $region11: #{tpu_custom_call.1} parent=1 // pred_check_branch
      %22 = sbr.rel (0) target = $region13
    $region12: #{tpu_custom_call.1} parent=1 // pred_region
      %23 = dma.done [#allocation3], 1024
    $region13: #{tpu_custom_call.1} parent=1 // pred_fallthru
      _
    %v24 = vld [vmem:[#allocation2] sm:$0xff]
    %v25 = vld [vmem:[#allocation2 + $0x8] sm:$0xff]
    %v26 = vld [vmem:[#allocation2 + $0x10] sm:$0xff]
    %v27 = vld [vmem:[#allocation2 + $0x18] sm:$0xff]
    %v28 = vld [vmem:[#allocation2 + $0x20] sm:$0xff]
    %v29 = vld [vmem:[#allocation2 + $0x28] sm:$0xff]
    %v30 = vld [vmem:[#allocation2 + $0x30] sm:$0xff]
    %v31 = vld [vmem:[#allocation2 + $0x38] sm:$0xff]
    %v32 = vld [vmem:[%s0] sm:$0xf]
    %34 = vset.pattern.permute.xlu0 0
    %35 = vperm.xlu0 %34, %v32
    %v36 = vpop.permute.xlu0 %35
    %v38 = vunpack.c.l.s4 839922192
    %v39 = vunpack.c.0.s8 %v38
    %v40 = vlaneseq
    %v41 = vshrl.u32 %v40, 7
    %v42 = vsub.s32 %v39, %v41
    %v43 = vrot.slane %v36, %v42
    %v45 = vmul.f32 %v24, %v43
    %v46 = vmul.f32 %v25, %v43
    %v47 = vmul.f32 %v26, %v43
    %v48 = vmul.f32 %v27, %v43
    %v49 = vmul.f32 %v28, %v43
    %v50 = vmul.f32 %v29, %v43
    %v51 = vmul.f32 %v30, %v43
    %v52 = vmul.f32 %v31, %v43
    %53 = vst [vmem:[#allocation5] sm:$0xff] %v45
    %54 = vst [vmem:[#allocation5 + $0x8] sm:$0xff] %v46
    %55 = vst [vmem:[#allocation5 + $0x10] sm:$0xff] %v47
    %56 = vst [vmem:[#allocation5 + $0x18] sm:$0xff] %v48
    %57 = vst [vmem:[#allocation5 + $0x20] sm:$0xff] %v49
    %58 = vst [vmem:[#allocation5 + $0x28] sm:$0xff] %v50
    %59 = vst [vmem:[#allocation5 + $0x30] sm:$0xff] %v51
    %60 = vst [vmem:[#allocation5 + $0x38] sm:$0xff] %v52
    // Predicated region
    $region14: #{tpu_custom_call.1} parent=1 // pred_check
      _
    $region15: #{tpu_custom_call.1} parent=1 // pred_check_branch
      %62 = sbr.rel (0) target = $region17
    $region16: #{tpu_custom_call.1} parent=1 // pred_region
      %s64 = ssub.s32 1024, 1024
      %65 = vsyncadd [#allocation4], %s64
      %s67 = sshll.u32 [#allocation5], 4
      %s68 = int_to_ptr.vmem [resolvable:$true] %s67
      %70 = dma.vmem_to_hbm [thread:$0]  %s68, 1024, %s2, [#allocation4]
    $region17: #{tpu_custom_call.1} parent=1 // pred_fallthru
      _
    // Predicated region
    $region18: #{tpu_custom_call.1} parent=1 // pred_check
      _
    $region19: #{tpu_custom_call.1} parent=1 // pred_check_branch
      %72 = sbr.rel (0) target = $region21
    $region20: #{tpu_custom_call.1} parent=1 // pred_region
      %73 = dma.done [#allocation4], 1024
    $region21: #{tpu_custom_call.1} parent=1 // pred_fallthru
      _
    %74 = vsyncpa [#allocation3], 1
    %75 = vsyncpa [#allocation4], 1

</llo_original>
